<compile_context>
chip_gen: v7x
topology: tpu7x:2x2x1
jax: 0.10.0
libtpu: 0.0.40
codegen_flags: <defaults>
</compile_context>

<pallas_src>
from functools import partial

import jax
import jax.numpy as jnp
from jax.experimental import pallas as pl
from jax.experimental.pallas import tpu as pltpu

GAMMA = 0.99
BROW = 16          # slab row-block alignment: bf16 packs (16, 128) per vreg tile


def _round_up(x, m):
    return ((x + m - 1) // m) * m


def _is_v5e():
    """True on TPU v5e (128-wide MXU) -> use the split block-diagonal layer-2 path."""
    try:
        kind = jax.devices()[0].device_kind.lower()
        return ("v5 lite" in kind) or ("v5e" in kind) or ("v5litepod" in kind)
    except Exception:
        return False


# --------------------------------------------------------------------------- #
# Kernel
# --------------------------------------------------------------------------- #
def _make_kernel(S, SP, HF, NOUT, split_l2):
    """Fused-MLP kernel for static sizes.

    bf16 weight-slab row layout (every block offset is a multiple of 16):
      [0        : SP      )  W1a (SP, HF)   -- from s   -> branch cols 0:2H   (g | h(s))
      [SP       : 2*SP    )  W1b (SP, HF)   -- from s'  -> branch cols 2H:4H  (h(s') | goal)
      [2*SP     : +BROW   )  b1  in row 0
      [...      : +HF     )  W2  (HF, HF)   block-diagonal
      [...      : +BROW   )  b2
      [...      : +HF     )  W3  (HF, HF)   cols 0:NOUT meaningful
      [...      : +BROW   )  b3
    """
    BF = jnp.bfloat16
    H2 = HF // 2
    r_w1b = SP
    r_b1 = 2 * SP
    r_w2 = r_b1 + BROW
    r_b2 = r_w2 + HF
    r_w3 = r_b2 + BROW
    r_b3 = r_w3 + HF

    def kernel(s_ref, sp_ref, aux_ref, w_ref, out_ref):
        # Activations arrive f32; cast to bf16 only as MXU operands.
        xs = s_ref[...].astype(BF)          # (TB, S)
        xn = sp_ref[...].astype(BF)         # (TB, S)

        # Bias rows (tile-aligned 1-row slices), kept in f32 for the epilogue path.
        b1 = w_ref[r_b1:r_b1 + 1, :].astype(jnp.float32)            # (1, HF)
        b2 = w_ref[r_b2:r_b2 + 1, :].astype(jnp.float32)            # (1, HF)
        b3 = w_ref[r_b3:r_b3 + 1, 0:NOUT].astype(jnp.float32)       # (1, NOUT)

        if split_l2:
            # v5e path: branches (g|h(s)) occupy cols 0:128, (h(s')|goal) cols 128:256,
            # and W2 is block-diagonal at 128 granularity -> skip the all-zero
            # off-diagonal quadrants (2 MXU tile-passes instead of 4 on layer 2).
            h1a = jnp.maximum(
                jnp.dot(xs, w_ref[0:S, 0:H2],
                        preferred_element_type=jnp.float32) + b1[:, 0:H2], 0.0)
            h1b = jnp.maximum(
                jnp.dot(xn, w_ref[r_w1b:r_w1b + S, H2:HF],
                        preferred_element_type=jnp.float32) + b1[:, H2:HF], 0.0)
            h2a = jnp.maximum(
                jnp.dot(h1a.astype(BF), w_ref[r_w2:r_w2 + H2, 0:H2],
                        preferred_element_type=jnp.float32) + b2[:, 0:H2], 0.0)
            h2b = jnp.maximum(
                jnp.dot(h1b.astype(BF), w_ref[r_w2 + H2:r_w2 + HF, H2:HF],
                        preferred_element_type=jnp.float32) + b2[:, H2:HF], 0.0)
            y = (jnp.dot(h2a.astype(BF), w_ref[r_w3:r_w3 + H2, 0:NOUT],
                         preferred_element_type=jnp.float32)
                 + jnp.dot(h2b.astype(BF), w_ref[r_w3 + H2:r_w3 + HF, 0:NOUT],
                           preferred_element_type=jnp.float32) + b3)
        else:
            # v6e/v7x path: dense 256-wide matmuls keep the 256-wide MXU full.
            h1 = jnp.maximum(
                jnp.dot(xs, w_ref[0:S, :], preferred_element_type=jnp.float32)
                + jnp.dot(xn, w_ref[r_w1b:r_w1b + S, :],
                          preferred_element_type=jnp.float32) + b1, 0.0)
            h2 = jnp.maximum(
                jnp.dot(h1.astype(BF), w_ref[r_w2:r_w2 + HF, :],
                        preferred_element_type=jnp.float32) + b2, 0.0)
            y = jnp.dot(h2.astype(BF), w_ref[r_w3:r_w3 + HF, 0:NOUT],
                        preferred_element_type=jnp.float32) + b3

        a = y[:, 0:1]        # r(s) - v(s)
        nv = y[:, 1:2]       # v(s')
        l0 = y[:, 2:3]       # goal logits (softmax omitted: argmax-invariant)
        l1 = y[:, 3:4]
        l2 = y[:, 4:5]
        # score_mapping = [0, -1, 1] indexed by argmax with first-max tie-breaking
        # (matches torch.argmax / jnp.argmax semantics).
        goal_rew = jnp.where((l0 >= l1) & (l0 >= l2), 0.0,
                             jnp.where(l1 >= l2, -1.0, 1.0))

        c0 = aux_ref[:, 0:1]       # GAMMA * (1 - dones), precomputed f32
        lp = aux_ref[:, 1:2]       # log_pis
        out_ref[...] = a + c0 * nv + goal_rew - lp

    return kernel


# --------------------------------------------------------------------------- #
# Host-side weight packing (done once per parameter set) -> single bf16 slab
# --------------------------------------------------------------------------- #
def pack_params(params, state_dim, hidden=64):
    (gW1, gb1, gW2, gb2, gW3, gb3,
     hW1, hb1, hW2, hb2, hW3, hb3,
     qW1, qb1, qW2, qb2, qW3, qb3) = params

    S, H = state_dim, hidden
    HF = 4 * H                    # fused hidden width (branches: g | h(s) | h(s') | goal)
    SP = _round_up(S, BROW)

    # layer 1, split into the s block and the s' block (no wrapper concat needed)
    W1a = jnp.zeros((SP, HF), jnp.float32)            # from s  -> g | h(s)
    W1a = W1a.at[:S, 0:H].set(gW1)
    W1a = W1a.at[:S, H:2 * H].set(hW1)
    W1b = jnp.zeros((SP, HF), jnp.float32)            # from s' -> h(s') | goal
    W1b = W1b.at[:S, 2 * H:3 * H].set(hW1)
    W1b = W1b.at[:S, 3 * H:4 * H].set(qW1)
    b1 = jnp.concatenate([gb1, hb1, hb1, qb1], axis=1)            # (1, HF)

    # layer 2: block-diagonal (branches stay independent)
    W2 = jnp.zeros((HF, HF), jnp.float32)
    W2 = W2.at[0:H, 0:H].set(gW2)
    W2 = W2.at[H:2 * H, H:2 * H].set(hW2)
    W2 = W2.at[2 * H:3 * H, 2 * H:3 * H].set(hW2)
    W2 = W2.at[3 * H:4 * H, 3 * H:4 * H].set(qW2)
    b2 = jnp.concatenate([gb2, hb2, hb2, qb2], axis=1)            # (1, HF)

    # layer 3 (width padded to HF; cols 0..4 meaningful):
    #   col0 = r(s) - v(s),  col1 = v(s'),  cols 2..4 = goal logits
    W3 = jnp.zeros((HF, HF), jnp.float32)
    W3 = W3.at[0:H, 0:1].set(gW3)
    W3 = W3.at[H:2 * H, 0:1].set(-hW3)
    W3 = W3.at[2 * H:3 * H, 1:2].set(hW3)
    W3 = W3.at[3 * H:4 * H, 2:5].set(qW3)
    b3 = jnp.zeros((1, HF), jnp.float32)
    b3 = b3.at[0, 0].set(gb3[0, 0] - hb3[0, 0])
    b3 = b3.at[0, 1].set(hb3[0, 0])
    b3 = b3.at[0, 2:5].set(qb3[0, :])

    def row_block(r):             # embed a (1, C) bias row into a (BROW, HF) block
        blk = jnp.zeros((BROW, HF), jnp.float32)
        return blk.at[0, : r.shape[1]].set(r[0])

    slab = jnp.concatenate(
        [W1a, W1b, row_block(b1), W2, row_block(b2), W3, row_block(b3)], axis=0)
    return slab.astype(jnp.bfloat16)        # (2*SP + 3*BROW + 2*HF, HF) bf16


# --------------------------------------------------------------------------- #
# Forward wrapper
# --------------------------------------------------------------------------- #
@partial(jax.jit, static_argnames=("hidden", "block_b", "split_l2"))
def airl_forward(states, dones, log_pis, next_states, w_slab,
                 hidden=64, block_b=2048, split_l2=None):
    if split_l2 is None:                       # trace-time hardware dispatch
        split_l2 = _is_v5e()

    B, S = states.shape
    HF = 4 * hidden
    NOUT = 128
    SP = _round_up(S, BROW)
    R = 2 * SP + 3 * BROW + 2 * HF
    assert w_slab.shape == (R, HF), (w_slab.shape, (R, HF))
    assert w_slab.dtype == jnp.bfloat16

    states = states.astype(jnp.float32)
    next_states = next_states.astype(jnp.float32)
    # aux col0 = GAMMA*(1 - dones) (GAMMA folded host-side), col1 = log_pis.
    aux = jnp.concatenate([GAMMA * (1.0 - dones.astype(jnp.float32)),
                           log_pis.astype(jnp.float32)], axis=1)        # (B, 2)

    # Batch tile sizing: big tiles to amortize per-grid-step overhead, but keep the
    # grid length >= 2 when the batch allows so v7x's two TensorCores both get work.
    Bp8 = _round_up(B, 8)
    TB = _round_up(min(block_b, Bp8), 8)
    if Bp8 > 8 and Bp8 <= TB:
        TB = _round_up((Bp8 + 1) // 2, 8)
    Bp = _round_up(Bp8, TB)
    if Bp != B:
        pad = ((0, Bp - B), (0, 0))
        states = jnp.pad(states, pad)
        next_states = jnp.pad(next_states, pad)
        aux = jnp.pad(aux, pad)
    grid = (Bp // TB,)

    kernel = _make_kernel(S, SP, HF, NOUT, split_l2)

    out = pl.pallas_call(
        kernel,
        out_shape=jax.ShapeDtypeStruct((Bp, 1), jnp.float32),
        grid_spec=pltpu.PrefetchScalarGridSpec(
            num_scalar_prefetch=0,
            grid=grid,
            in_specs=[
                pl.BlockSpec((TB, S), lambda i: (i, 0)),     # states tile
                pl.BlockSpec((TB, S), lambda i: (i, 0)),     # next_states tile
                pl.BlockSpec((TB, 2), lambda i: (i, 0)),     # GAMMA*(1-dones) | log_pis
                pl.BlockSpec((R, HF), lambda i: (0, 0)),     # bf16 weight slab, VMEM-resident
            ],
            out_specs=pl.BlockSpec((TB, 1), lambda i: (i, 0)),
        ),
        compiler_params=pltpu.CompilerParams(
            dimension_semantics=("parallel",),
            vmem_limit_bytes=32 * 1024 * 1024,
        ),
    )(states, next_states, aux, w_slab)
    return out[:B]


# --------------------------------------------------------------------------- #
# PyTorch-Linear-style init + pure-JAX reference (unfused) for verification
# --------------------------------------------------------------------------- #
def init_params(key, state_dim, hidden=64):
    """Deterministic nn.Linear-style init; weights stored as (in, out)."""
    def linear(k, fan_in, fan_out):
        k1, k2 = jax.random.split(k)
        bound = 1.0 / jnp.sqrt(jnp.float32(fan_in))
        W = jax.random.uniform(k1, (fan_in, fan_out), jnp.float32, -bound, bound)
        b = jax.random.uniform(k2, (1, fan_out), jnp.float32, -bound, bound)
        return W, b

    keys = jax.random.split(key, 9)
    params = []
    for i, (fi, fo) in enumerate([(state_dim, hidden), (hidden, hidden), (hidden, 1)]):
        W, b = linear(keys[i], fi, fo); params += [W, b]          # g_net
    for i, (fi, fo) in enumerate([(state_dim, hidden), (hidden, hidden), (hidden, 1)]):
        W, b = linear(keys[3 + i], fi, fo); params += [W, b]      # h_net
    for i, (fi, fo) in enumerate([(state_dim, hidden), (hidden, hidden), (hidden, 3)]):
        W, b = linear(keys[6 + i], fi, fo); params += [W, b]      # goal_net (+ Softmax)
    return tuple(params)


def reference_forward(states, dones, log_pis, next_states, params,
                      matmul_dtype=jnp.float32):
    """Unfused reference following the PyTorch module exactly (g_net / h_net /
    goal_net, softmax + argmax + score_mapping).  With matmul_dtype=bf16 the
    weights/biases/matmul-inputs are rounded to bf16 with f32 accumulation,
    i.e. the same numerics the MXU kernel uses."""
    (gW1, gb1, gW2, gb2, gW3, gb3,
     hW1, hb1, hW2, hb2, hW3, hb3,
     qW1, qb1, qW2, qb2, qW3, qb3) = params

    q = lambda a: a.astype(matmul_dtype)
    qb = lambda a: a.astype(matmul_dtype).astype(jnp.float32)

    def mlp(x, W1, b1, W2, b2, W3, b3):
        h1 = jnp.maximum(jnp.dot(q(x), q(W1), preferred_element_type=jnp.float32) + qb(b1), 0.0)
        h2 = jnp.maximum(jnp.dot(q(h1), q(W2), preferred_element_type=jnp.float32) + qb(b2), 0.0)
        return jnp.dot(q(h2), q(W3), preferred_element_type=jnp.float32) + qb(b3)

    rs = mlp(states, gW1, gb1, gW2, gb2, gW3, gb3)
    vs = mlp(states, hW1, hb1, hW2, hb2, hW3, hb3)
    next_vs = mlp(next_states, hW1, hb1, hW2, hb2, hW3, hb3)
    probs = jax.nn.softmax(mlp(next_states, qW1, qb1, qW2, qb2, qW3, qb3), axis=1)
    preds = jnp.argmax(probs, axis=1)
    goal_rew = jnp.array([0.0, -1.0, 1.0], jnp.float32)[preds][:, None]
    f = rs + GAMMA * (1.0 - dones) * next_vs - vs + goal_rew
    return f - log_pis


if __name__ == "__main__":
    B, S, H = 8, 16, 64   # batch, flattened state dim, hidden units (module default 64)

    root = jax.random.PRNGKey(0)
    k_states, k_next, k_dones, k_logpi, k_params = jax.random.split(root, 5)

    states = jax.random.normal(k_states, (B, S), jnp.float32)
    next_states = jax.random.normal(k_next, (B, S), jnp.float32)
    dones = jax.random.bernoulli(k_dones, 0.25, (B, 1)).astype(jnp.float32)
    log_pis = -jnp.abs(jax.random.normal(k_logpi, (B, 1), jnp.float32))

    params = init_params(k_params, S, H)
    w_slab = pack_params(params, S, H)      # one-time host-side fusion + bf16 packing

    out = airl_forward(states, dones, log_pis, next_states, w_slab)
    out = jax.block_until_ready(out)

    # Verify against the module-structured reference run at matched (bf16-operand,
    # f32-accumulate) precision.  The f32 reference (matmul_dtype=jnp.float32) agrees
    # to ~1e-2 except where goal logits are nearly tied (argmax sensitivity of bf16).
    ref = reference_forward(states, dones, log_pis, next_states, params,
                            matmul_dtype=jnp.bfloat16)
    assert out.shape == (B, 1)
    assert jnp.allclose(out, ref, atol=5e-3, rtol=5e-3), (out, ref)

    print("KERNEL_OK")
</pallas_src>

<mosaic_0001>
module attributes {stable_mosaic.version = 11 : i64} {
  func.func @kernel(%arg0: i32, %arg1: memref<8x16xf32, #tpu.memory_space<vmem>>, %arg2: memref<8x16xf32, #tpu.memory_space<vmem>>, %arg3: memref<8x2xf32, #tpu.memory_space<vmem>>, %arg4: memref<592x256xbf16, #tpu.memory_space<vmem>>, %arg5: memref<8x1xf32, #tpu.memory_space<vmem>>) attributes {dimension_semantics = [#tpu.dimension_semantics<parallel>], iteration_bounds = array<i64: 1>, scalar_prefetch = 0 : i64, scratch_operands = 0 : i64, tpu.core_type = #tpu.core_type<tc>, window_params = [{transform_indices = @transform_0, window_bounds = array<i64: 8, 16>}, {transform_indices = @transform_1, window_bounds = array<i64: 8, 16>}, {transform_indices = @transform_2, window_bounds = array<i64: 8, 2>}, {pipeline_mode = #tpu.pipeline_mode<synchronous>, transform_indices = @transform_3, window_bounds = array<i64: 592, 256>}, {transform_indices = @transform_4, window_bounds = array<i64: 8, 1>}]} {
    %c0 = arith.constant 0 : index
    %c0_0 = arith.constant 0 : index
    %0 = vector.load %arg1[%c0, %c0_0] : memref<8x16xf32, #tpu.memory_space<vmem>>, vector<8x16xf32>
    %1 = arith.truncf %0 : vector<8x16xf32> to vector<8x16xbf16>
    %c0_1 = arith.constant 0 : index
    %c0_2 = arith.constant 0 : index
    %2 = vector.load %arg2[%c0_1, %c0_2] : memref<8x16xf32, #tpu.memory_space<vmem>>, vector<8x16xf32>
    %3 = arith.truncf %2 : vector<8x16xf32> to vector<8x16xbf16>
    %c32 = arith.constant 32 : index
    %c0_3 = arith.constant 0 : index
    %4 = vector.load %arg4[%c32, %c0_3] : memref<592x256xbf16, #tpu.memory_space<vmem>>, vector<1x256xbf16>
    %5 = arith.extf %4 : vector<1x256xbf16> to vector<1x256xf32>
    %c304 = arith.constant 304 : index
    %c0_4 = arith.constant 0 : index
    %6 = vector.load %arg4[%c304, %c0_4] : memref<592x256xbf16, #tpu.memory_space<vmem>>, vector<1x256xbf16>
    %7 = arith.extf %6 : vector<1x256xbf16> to vector<1x256xf32>
    %c576 = arith.constant 576 : index
    %c0_5 = arith.constant 0 : index
    %8 = vector.load %arg4[%c576, %c0_5] : memref<592x256xbf16, #tpu.memory_space<vmem>>, vector<1x128xbf16>
    %9 = arith.extf %8 : vector<1x128xbf16> to vector<1x128xf32>
    %c0_6 = arith.constant 0 : index
    %c0_7 = arith.constant 0 : index
    %10 = vector.load %arg4[%c0_6, %c0_7] : memref<592x256xbf16, #tpu.memory_space<vmem>>, vector<16x256xbf16>
    %cst = arith.constant dense<0.000000e+00> : vector<8x256xf32>
    %11 = tpu.matmul %1, %10, %cst {dimension_numbers = #tpu.dot_dimension_numbers<[1], [0], [0], [1], [0, 0, 1, 1], [], []>} : vector<8x16xbf16>, vector<16x256xbf16>, vector<8x256xf32> -> vector<8x256xf32>
    %c16 = arith.constant 16 : index
    %c0_8 = arith.constant 0 : index
    %12 = vector.load %arg4[%c16, %c0_8] : memref<592x256xbf16, #tpu.memory_space<vmem>>, vector<16x256xbf16>
    %cst_9 = arith.constant dense<0.000000e+00> : vector<8x256xf32>
    %13 = tpu.matmul %3, %12, %cst_9 {dimension_numbers = #tpu.dot_dimension_numbers<[1], [0], [0], [1], [0, 0, 1, 1], [], []>} : vector<8x16xbf16>, vector<16x256xbf16>, vector<8x256xf32> -> vector<8x256xf32>
    %14 = arith.addf %11, %13 : vector<8x256xf32>
    %15 = vector.broadcast %5 : vector<1x256xf32> to vector<8x256xf32>
    %16 = arith.addf %14, %15 : vector<8x256xf32>
    %cst_10 = arith.constant 0.000000e+00 : f32
    %17 = vector.broadcast %cst_10 : f32 to vector<8x256xf32>
    %18 = arith.maximumf %16, %17 : vector<8x256xf32>
    %19 = arith.truncf %18 : vector<8x256xf32> to vector<8x256xbf16>
    %c48 = arith.constant 48 : index
    %c0_11 = arith.constant 0 : index
    %20 = vector.load %arg4[%c48, %c0_11] : memref<592x256xbf16, #tpu.memory_space<vmem>>, vector<256x256xbf16>
    %cst_12 = arith.constant dense<0.000000e+00> : vector<8x256xf32>
    %21 = tpu.matmul %19, %20, %cst_12 {dimension_numbers = #tpu.dot_dimension_numbers<[1], [0], [0], [1], [0, 0, 1, 1], [], []>} : vector<8x256xbf16>, vector<256x256xbf16>, vector<8x256xf32> -> vector<8x256xf32>
    %22 = vector.broadcast %7 : vector<1x256xf32> to vector<8x256xf32>
    %23 = arith.addf %21, %22 : vector<8x256xf32>
    %cst_13 = arith.constant 0.000000e+00 : f32
    %24 = vector.broadcast %cst_13 : f32 to vector<8x256xf32>
    %25 = arith.maximumf %23, %24 : vector<8x256xf32>
    %26 = arith.truncf %25 : vector<8x256xf32> to vector<8x256xbf16>
    %c320 = arith.constant 320 : index
    %c0_14 = arith.constant 0 : index
    %27 = vector.load %arg4[%c320, %c0_14] : memref<592x256xbf16, #tpu.memory_space<vmem>>, vector<256x128xbf16>
    %cst_15 = arith.constant dense<0.000000e+00> : vector<8x128xf32>
    %28 = tpu.matmul %26, %27, %cst_15 {dimension_numbers = #tpu.dot_dimension_numbers<[1], [0], [0], [1], [0, 0, 1, 1], [], []>} : vector<8x256xbf16>, vector<256x128xbf16>, vector<8x128xf32> -> vector<8x128xf32>
    %29 = vector.broadcast %9 : vector<1x128xf32> to vector<8x128xf32>
    %30 = arith.addf %28, %29 : vector<8x128xf32>
    %31 = vector.extract_strided_slice %30 {offsets = [0, 0], sizes = [8, 1], strides = [1, 1]} : vector<8x128xf32> to vector<8x1xf32>
    %32 = vector.extract_strided_slice %30 {offsets = [0, 1], sizes = [8, 1], strides = [1, 1]} : vector<8x128xf32> to vector<8x1xf32>
    %33 = vector.extract_strided_slice %30 {offsets = [0, 2], sizes = [8, 1], strides = [1, 1]} : vector<8x128xf32> to vector<8x1xf32>
    %34 = vector.extract_strided_slice %30 {offsets = [0, 3], sizes = [8, 1], strides = [1, 1]} : vector<8x128xf32> to vector<8x1xf32>
    %35 = vector.extract_strided_slice %30 {offsets = [0, 4], sizes = [8, 1], strides = [1, 1]} : vector<8x128xf32> to vector<8x1xf32>
    %36 = arith.cmpf oge, %33, %34 : vector<8x1xf32>
    %37 = arith.cmpf oge, %33, %35 : vector<8x1xf32>
    %38 = arith.andi %36, %37 : vector<8x1xi1>
    %39 = arith.cmpf oge, %34, %35 : vector<8x1xf32>
    %cst_16 = arith.constant -1.000000e+00 : f32
    %cst_17 = arith.constant 1.000000e+00 : f32
    %40 = vector.broadcast %cst_16 : f32 to vector<8x1xf32>
    %41 = vector.broadcast %cst_17 : f32 to vector<8x1xf32>
    %42 = arith.select %39, %40, %41 : vector<8x1xi1>, vector<8x1xf32>
    %cst_18 = arith.constant 0.000000e+00 : f32
    %43 = vector.broadcast %cst_18 : f32 to vector<8x1xf32>
    %44 = arith.select %38, %43, %42 : vector<8x1xi1>, vector<8x1xf32>
    %c0_19 = arith.constant 0 : index
    %c0_20 = arith.constant 0 : index
    %45 = vector.load %arg3[%c0_19, %c0_20] : memref<8x2xf32, #tpu.memory_space<vmem>>, vector<8x1xf32>
    %c0_21 = arith.constant 0 : index
    %c1 = arith.constant 1 : index
    %46 = vector.load %arg3[%c0_21, %c1] : memref<8x2xf32, #tpu.memory_space<vmem>>, vector<8x1xf32>
    %47 = arith.mulf %45, %32 : vector<8x1xf32>
    %48 = arith.addf %31, %47 : vector<8x1xf32>
    %49 = arith.addf %48, %44 : vector<8x1xf32>
    %50 = arith.subf %49, %46 : vector<8x1xf32>
    %c0_22 = arith.constant 0 : index
    %c0_23 = arith.constant 0 : index
    %51 = vector.load %arg5[%c0_22, %c0_23] : memref<8x1xf32, #tpu.memory_space<vmem>>, vector<8x1xf32>
    tpu.vector_store %arg5[%c0_22, %c0_23], %50 {strides = array<i32>} : memref<8x1xf32, #tpu.memory_space<vmem>>, vector<8x1xf32>,
    return
  }
  func.func @transform_0(%arg0: i32) -> (i32, i32) {
    %c0_i32 = arith.constant 0 : i32
    %c0_i32_0 = arith.constant 0 : i32
    return %arg0, %c0_i32 : i32, i32
  }
  func.func @transform_1(%arg0: i32) -> (i32, i32) {
    %c0_i32 = arith.constant 0 : i32
    %c0_i32_0 = arith.constant 0 : i32
    return %arg0, %c0_i32 : i32, i32
  }
  func.func @transform_2(%arg0: i32) -> (i32, i32) {
    %c0_i32 = arith.constant 0 : i32
    %c0_i32_0 = arith.constant 0 : i32
    return %arg0, %c0_i32 : i32, i32
  }
  func.func @transform_3(%arg0: i32) -> (i32, i32) {
    %c0_i32 = arith.constant 0 : i32
    %c0_i32_0 = arith.constant 0 : i32
    %c0_i32_1 = arith.constant 0 : i32
    return %c0_i32, %c0_i32_0 : i32, i32
  }
  func.func @transform_4(%arg0: i32) -> (i32, i32) {
    %c0_i32 = arith.constant 0 : i32
    %c0_i32_0 = arith.constant 0 : i32
    return %arg0, %c0_i32 : i32, i32
  }
}

</mosaic_0001>

<llo_original>
// kernel: airl_forward.1
$region0: #{airl_forward.1}
  #allocation0 [shape = 'u32[]', space=smem, size = 0x4, offset = 0x4, fixed_abs, tag = 'smem constant byte address 0x4 - core index']
  #allocation1 [shape = 'u32[144,128]{1,0:T(1,128)}', space=vmem, size = 0x12000, scoped, tag = 'internal scratch']
  %s0 = inlined_call_operand.vmem [shape: f32[8,16], index: 0, kind: input, shape index: {}]
  %s1 = inlined_call_operand.vmem [shape: f32[8,16], index: 1, kind: input, shape index: {}]
  %s2 = inlined_call_operand.vmem [shape: f32[8,2], index: 2, kind: input, shape index: {}]
  %s3 = inlined_call_operand.hbm [shape: bf16[592,256], index: 3, kind: input, shape index: {}]
  %s4 = inlined_call_operand.vmem [shape: f32[8,1], index: 4, kind: output, shape index: {}]
  %s5 = sld [smem:[#allocation0]]
  $region30: #{airl_forward.1} parent=0
    _
  %s7 = ssub.s32 1, %s5
  %s8 = scalar_select 0, %s7, %s5
  $region1: #{airl_forward.1} parent=0
    #allocation2 [shape = 'u8[303104]{0}', space=vmem, size = 0x4a000, scoped, tag = 'input window, operand 3, single buffered']
    #allocation3 [shape = 's32[1]{0}', space=sflag, size = 0x4, scoped, tag = 'scoped memory for airl_forward.1']
    %9 = vsyncpa [#allocation3], 0
    // Predicated region
    $region2: #{airl_forward.1} parent=1 // pred_check
      _
    $region3: #{airl_forward.1} parent=1 // pred_check_branch
      %11 = sbr.rel (0) target = $region5
    $region4: #{airl_forward.1} parent=1 // pred_region
      _
    $region5: #{airl_forward.1} parent=1 // pred_fallthru
      _
    // Predicated region
    $region6: #{airl_forward.1} parent=1 // pred_check
      _
    $region7: #{airl_forward.1} parent=1 // pred_check_branch
      %13 = sbr.rel (0) target = $region9
    $region8: #{airl_forward.1} parent=1 // pred_region
      _
    $region9: #{airl_forward.1} parent=1 // pred_fallthru
      _
    // Predicated region
    $region10: #{airl_forward.1} parent=1 // pred_check
      _
    $region11: #{airl_forward.1} parent=1 // pred_check_branch
      %15 = sbr.rel (0) target = $region13
    $region12: #{airl_forward.1} parent=1 // pred_region
      _
    $region13: #{airl_forward.1} parent=1 // pred_fallthru
      _
    // Predicated region
    $region14: #{airl_forward.1} parent=1 // pred_check
      _
    $region15: #{airl_forward.1} parent=1 // pred_check_branch
      %17 = sbr.rel (0) target = $region17
    $region16: #{airl_forward.1} parent=1 // pred_region
      %s19 = ssub.s32 9472, 9472
      %20 = vsyncadd [#allocation3], %s19
      %s21 = sshll.u32 [#allocation2], 4
      %s22 = int_to_ptr.vmem [resolvable:$true] %s21
      %27 = dma.hbm_to_vmem [thread:$0]  %s3, 9472, %s22, [#allocation3], 128, 128, 8
    $region17: #{airl_forward.1} parent=1 // pred_fallthru
      _
    // Predicated region
    $region18: #{airl_forward.1} parent=1 // pred_check
      _
    $region19: #{airl_forward.1} parent=1 // pred_check_branch
      %29 = sbr.rel (0) target = $region21
    $region20: #{airl_forward.1} parent=1 // pred_region
      %30 = dma.done [#allocation3], 9472
    $region21: #{airl_forward.1} parent=1 // pred_fallthru
      _
    %v32 = vld [vmem:[%s0] sm:$0xff]
    %v33 = vpack.c.bf16 %v32, %v32
    %v34 = vld [vmem:[%s1] sm:$0xff]
    %v35 = vpack.c.bf16 %v34, %v34
    %v36 = vld [vmem:[#allocation2 + $0x20] sm:$0x11]
    %v37 = vunpack.c.l.bf16 %v36
    %v38 = vunpack.c.h.bf16 %v36
    %v39 = vld [vmem:[#allocation2 + $0x130] sm:$0x11]
    %v40 = vunpack.c.l.bf16 %v39
    %v41 = vunpack.c.h.bf16 %v39
    %v42 = vld [vmem:[#allocation2 + $0x240] sm:$0x1]
    %v43 = vunpack.c.l.bf16 %v42
    %v44 = vld [vmem:[#allocation2] sm:$0xff]
    %v45 = vld [vmem:[#allocation2 + $0x8] sm:$0xff]
    %v46 = vld [vmem:[#allocation2 + $0x10] sm:$0xff]
    %v47 = vld [vmem:[#allocation2 + $0x18] sm:$0xff]
    %v50 = vunpack.c.l.b16 %v46
    %v51 = vunpack.c.h.b16 %v46
    %v52 = vunpack.c.l.b16 %v47
    %v53 = vunpack.c.h.b16 %v47
    %v54 = vpack.c.b16 %v52, %v50
    %v55 = vpack.c.b16 %v53, %v51
    %vm58 = vcmask 130048
    %v60 = vsel %vm58, %v35, 0
    %62 = vmatprep.subr.bf16.mxu0 %v55
    %63 = vmatpush1.bf16.msra.mxu0 %v54
    %64 = vmatprep.subr.bf16.mxu0 0
    %65 = vmatpush1.bf16.msra.mxu0 0
    %66 = vmatprep.subr.bf16.mxu0 0
    %67 = vmatpush1.bf16.msra.mxu0 0
    %68 = vmatprep.subr.bf16.mxu0 0
    %69 = vmatpush1.bf16.msra.mxu0 0
    %70 = vmatprep.subr.bf16.mxu0 0
    %71 = vmatpush1.bf16.msra.mxu0 0
    %72 = vmatprep.subr.bf16.mxu0 0
    %73 = vmatpush1.bf16.msra.mxu0 0
    %74 = vmatprep.subr.bf16.mxu0 0
    %75 = vmatpush1.bf16.msra.mxu0 0
    %76 = vmatprep.subr.bf16.mxu0 0
    %77 = vmatpush1.bf16.msra.mxu0 0
    %78 = vmatprep.subr.bf16.mxu0 0
    %79 = vmatpush1.bf16.msra.mxu0 0
    %80 = vmatprep.subr.bf16.mxu0 0
    %81 = vmatpush1.bf16.msra.mxu0 0
    %82 = vmatprep.subr.bf16.mxu0 0
    %83 = vmatpush1.bf16.msra.mxu0 0
    %84 = vmatprep.subr.bf16.mxu0 0
    %85 = vmatpush1.bf16.msra.mxu0 0
    %86 = vmatprep.subr.bf16.mxu0 0
    %87 = vmatpush1.bf16.msra.mxu0 0
    %88 = vmatprep.subr.bf16.mxu0 0
    %89 = vmatpush1.bf16.msra.mxu0 0
    %90 = vmatprep.subr.bf16.mxu0 0
    %91 = vmatpush1.bf16.msra.mxu0 0
    %92 = vmatprep.subr.bf16.mxu0 0
    %93 = vmatpush1.bf16.msra.mxu0 0
    %94 = vmatprep.mubr.bf16.mxu0 0
    %95 = vmatmul.mubr.bf16.gmra.mrb[0].mxu0 %v60
    %v96 = vpop.f32.mrb[0].mxu0
    %v97 = vadd.f32 0.0, %v96
    %v98 = vpop.f32.mrb[0].mxu0
    %v99 = vadd.f32 0.0, %v98
    %v100 = vpop.f32.mrb[0].mxu0
    %v101 = vpop.f32.mrb[0].mxu0
    %102 = vdwg.mxu0
    %v105 = vunpack.c.l.b16 %v44
    %v106 = vunpack.c.h.b16 %v44
    %v107 = vunpack.c.l.b16 %v45
    %v108 = vunpack.c.h.b16 %v45
    %v109 = vpack.c.b16 %v107, %v105
    %v110 = vpack.c.b16 %v108, %v106
    %v114 = vsel %vm58, %v33, 0
    %116 = vmatprep.subr.bf16.mxu0 %v110
    %117 = vmatpush1.bf16.msra.mxu0 %v109
    %118 = vmatprep.subr.bf16.mxu0 0
    %119 = vmatpush1.bf16.msra.mxu0 0
    %120 = vmatprep.subr.bf16.mxu0 0
    %121 = vmatpush1.bf16.msra.mxu0 0
    %122 = vmatprep.subr.bf16.mxu0 0
    %123 = vmatpush1.bf16.msra.mxu0 0
    %124 = vmatprep.subr.bf16.mxu0 0
    %125 = vmatpush1.bf16.msra.mxu0 0
    %126 = vmatprep.subr.bf16.mxu0 0
    %127 = vmatpush1.bf16.msra.mxu0 0
    %128 = vmatprep.subr.bf16.mxu0 0
    %129 = vmatpush1.bf16.msra.mxu0 0
    %130 = vmatprep.subr.bf16.mxu0 0
    %131 = vmatpush1.bf16.msra.mxu0 0
    %132 = vmatprep.subr.bf16.mxu0 0
    %133 = vmatpush1.bf16.msra.mxu0 0
    %134 = vmatprep.subr.bf16.mxu0 0
    %135 = vmatpush1.bf16.msra.mxu0 0
    %136 = vmatprep.subr.bf16.mxu0 0
    %137 = vmatpush1.bf16.msra.mxu0 0
    %138 = vmatprep.subr.bf16.mxu0 0
    %139 = vmatpush1.bf16.msra.mxu0 0
    %140 = vmatprep.subr.bf16.mxu0 0
    %141 = vmatpush1.bf16.msra.mxu0 0
    %142 = vmatprep.subr.bf16.mxu0 0
    %143 = vmatpush1.bf16.msra.mxu0 0
    %144 = vmatprep.subr.bf16.mxu0 0
    %145 = vmatpush1.bf16.msra.mxu0 0
    %146 = vmatprep.subr.bf16.mxu0 0
    %147 = vmatpush1.bf16.msra.mxu0 0
    %148 = vmatprep.mubr.bf16.mxu0 0
    %149 = vmatmul.mubr.bf16.gmra.mrb[0].mxu0 %v114
    %v150 = vpop.f32.mrb[0].mxu0
    %v151 = vadd.f32 %v97, %v150
    %v152 = vpop.f32.mrb[0].mxu0
    %v153 = vadd.f32 %v99, %v152
    %v154 = vpop.f32.mrb[0].mxu0
    %v155 = vpop.f32.mrb[0].mxu0
    %156 = vdwg.mxu0
    %v157 = vlaneseq
    %v158 = vshrl.u32 %v157, 7
    %v159 = vsub.s32 0, %v158
    %v160 = vrot.slane %v37, %v159
    %v161 = vlaneseq
    %v162 = vshrl.u32 %v161, 7
    %v163 = vsub.s32 0, %v162
    %v164 = vrot.slane %v38, %v163
    %v165 = vadd.f32 %v151, %v160
    %v166 = vadd.f32 %v153, %v164
    %v167 = vmax.f32 %v165, 0.0
    %v168 = vmax.f32 %v166, 0.0
    %v169 = vpack.c.bf16 %v167, %v167
    %v170 = vpack.c.bf16 %v168, %v168
    %v171 = vld [vmem:[#allocation2 + $0x30] sm:$0xff]
    %v172 = vld [vmem:[#allocation2 + $0x38] sm:$0xff]
    %v173 = vld [vmem:[#allocation2 + $0x40] sm:$0xff]
    %v174 = vld [vmem:[#allocation2 + $0x48] sm:$0xff]
    %v175 = vld [vmem:[#allocation2 + $0x50] sm:$0xff]
    %v176 = vld [vmem:[#allocation2 + $0x58] sm:$0xff]
    %v177 = vld [vmem:[#allocation2 + $0x60] sm:$0xff]
    %v178 = vld [vmem:[#allocation2 + $0x68] sm:$0xff]
    %v179 = vld [vmem:[#allocation2 + $0x70] sm:$0xff]
    %v180 = vld [vmem:[#allocation2 + $0x78] sm:$0xff]
    %v181 = vld [vmem:[#allocation2 + $0x80] sm:$0xff]
    %v182 = vld [vmem:[#allocation2 + $0x88] sm:$0xff]
    %v183 = vld [vmem:[#allocation2 + $0x90] sm:$0xff]
    %v184 = vld [vmem:[#allocation2 + $0x98] sm:$0xff]
    %v185 = vld [vmem:[#allocation2 + $0xa0] sm:$0xff]
    %v186 = vld [vmem:[#allocation2 + $0xa8] sm:$0xff]
    %v187 = vld [vmem:[#allocation2 + $0xb0] sm:$0xff]
    %v188 = vld [vmem:[#allocation2 + $0xb8] sm:$0xff]
    %v189 = vld [vmem:[#allocation2 + $0xc0] sm:$0xff]
    %v190 = vld [vmem:[#allocation2 + $0xc8] sm:$0xff]
    %v191 = vld [vmem:[#allocation2 + $0xd0] sm:$0xff]
    %v192 = vld [vmem:[#allocation2 + $0xd8] sm:$0xff]
    %v193 = vld [vmem:[#allocation2 + $0xe0] sm:$0xff]
    %v194 = vld [vmem:[#allocation2 + $0xe8] sm:$0xff]
    %v195 = vld [vmem:[#allocation2 + $0xf0] sm:$0xff]
    %v196 = vld [vmem:[#allocation2 + $0xf8] sm:$0xff]
    %v197 = vld [vmem:[#allocation2 + $0x100] sm:$0xff]
    %v198 = vld [vmem:[#allocation2 + $0x108] sm:$0xff]
    %v199 = vld [vmem:[#allocation2 + $0x110] sm:$0xff]
    %v200 = vld [vmem:[#allocation2 + $0x118] sm:$0xff]
    %v201 = vld [vmem:[#allocation2 + $0x120] sm:$0xff]
    %v202 = vld [vmem:[#allocation2 + $0x128] sm:$0xff]
    %v203 = vlaneseq
    %v204 = vshrl.u32 %v203, 7
    %v205 = vsub.s32 0, %v204
    %v206 = vrot.slane %v40, %v205
    %v207 = vlaneseq
    %v208 = vshrl.u32 %v207, 7
    %v209 = vsub.s32 0, %v208
    %v210 = vrot.slane %v41, %v209
    %v243 = vunpack.c.l.b16 %v171
    %v244 = vunpack.c.h.b16 %v171
    %v245 = vunpack.c.l.b16 %v172
    %v246 = vunpack.c.h.b16 %v172
    %v247 = vunpack.c.l.b16 %v173
    %v248 = vunpack.c.h.b16 %v173
    %v249 = vunpack.c.l.b16 %v174
    %v250 = vunpack.c.h.b16 %v174
    %v251 = vunpack.c.l.b16 %v175
    %v252 = vunpack.c.h.b16 %v175
    %v253 = vunpack.c.l.b16 %v176
    %v254 = vunpack.c.h.b16 %v176
    %v255 = vunpack.c.l.b16 %v177
    %v256 = vunpack.c.h.b16 %v177
    %v257 = vunpack.c.l.b16 %v178
    %v258 = vunpack.c.h.b16 %v178
    %v259 = vunpack.c.l.b16 %v179
    %v260 = vunpack.c.h.b16 %v179
    %v261 = vunpack.c.l.b16 %v180
    %v262 = vunpack.c.h.b16 %v180
    %v263 = vunpack.c.l.b16 %v181
    %v264 = vunpack.c.h.b16 %v181
    %v265 = vunpack.c.l.b16 %v182
    %v266 = vunpack.c.h.b16 %v182
    %v267 = vunpack.c.l.b16 %v183
    %v268 = vunpack.c.h.b16 %v183
    %v269 = vunpack.c.l.b16 %v184
    %v270 = vunpack.c.h.b16 %v184
    %v271 = vunpack.c.l.b16 %v185
    %v272 = vunpack.c.h.b16 %v185
    %v273 = vunpack.c.l.b16 %v186
    %v274 = vunpack.c.h.b16 %v186
    %v275 = vunpack.c.l.b16 %v187
    %v276 = vunpack.c.h.b16 %v187
    %v277 = vunpack.c.l.b16 %v188
    %v278 = vunpack.c.h.b16 %v188
    %v279 = vunpack.c.l.b16 %v189
    %v280 = vunpack.c.h.b16 %v189
    %v281 = vunpack.c.l.b16 %v190
    %v282 = vunpack.c.h.b16 %v190
    %v283 = vunpack.c.l.b16 %v191
    %v284 = vunpack.c.h.b16 %v191
    %v285 = vunpack.c.l.b16 %v192
    %v286 = vunpack.c.h.b16 %v192
    %v287 = vunpack.c.l.b16 %v193
    %v288 = vunpack.c.h.b16 %v193
    %v289 = vunpack.c.l.b16 %v194
    %v290 = vunpack.c.h.b16 %v194
    %v291 = vunpack.c.l.b16 %v195
    %v292 = vunpack.c.h.b16 %v195
    %v293 = vunpack.c.l.b16 %v196
    %v294 = vunpack.c.h.b16 %v196
    %v295 = vunpack.c.l.b16 %v197
    %v296 = vunpack.c.h.b16 %v197
    %v297 = vunpack.c.l.b16 %v198
    %v298 = vunpack.c.h.b16 %v198
    %v299 = vunpack.c.l.b16 %v199
    %v300 = vunpack.c.h.b16 %v199
    %v301 = vunpack.c.l.b16 %v200
    %v302 = vunpack.c.h.b16 %v200
    %v303 = vunpack.c.l.b16 %v201
    %v304 = vunpack.c.h.b16 %v201
    %v305 = vunpack.c.l.b16 %v202
    %v306 = vunpack.c.h.b16 %v202
    %v307 = vpack.c.b16 %v245, %v243
    %v308 = vpack.c.b16 %v246, %v244
    %v309 = vpack.c.b16 %v249, %v247
    %v310 = vpack.c.b16 %v250, %v248
    %v311 = vpack.c.b16 %v253, %v251
    %v312 = vpack.c.b16 %v254, %v252
    %v313 = vpack.c.b16 %v257, %v255
    %v314 = vpack.c.b16 %v258, %v256
    %v315 = vpack.c.b16 %v261, %v259
    %v316 = vpack.c.b16 %v262, %v260
    %v317 = vpack.c.b16 %v265, %v263
    %v318 = vpack.c.b16 %v266, %v264
    %v319 = vpack.c.b16 %v269, %v267
    %v320 = vpack.c.b16 %v270, %v268
    %v321 = vpack.c.b16 %v273, %v271
    %v322 = vpack.c.b16 %v274, %v272
    %v323 = vpack.c.b16 %v277, %v275
    %v324 = vpack.c.b16 %v278, %v276
    %v325 = vpack.c.b16 %v281, %v279
    %v326 = vpack.c.b16 %v282, %v280
    %v327 = vpack.c.b16 %v285, %v283
    %v328 = vpack.c.b16 %v286, %v284
    %v329 = vpack.c.b16 %v289, %v287
    %v330 = vpack.c.b16 %v290, %v288
    %v331 = vpack.c.b16 %v293, %v291
    %v332 = vpack.c.b16 %v294, %v292
    %v333 = vpack.c.b16 %v297, %v295
    %v334 = vpack.c.b16 %v298, %v296
    %v335 = vpack.c.b16 %v301, %v299
    %v336 = vpack.c.b16 %v302, %v300
    %v337 = vpack.c.b16 %v305, %v303
    %v338 = vpack.c.b16 %v306, %v304
    %371 = vmatprep.subr.bf16.mxu0 %v308
    %372 = vmatpush1.bf16.msra.mxu0 %v307
    %373 = vmatprep.subr.bf16.mxu0 %v310
    %374 = vmatpush1.bf16.msra.mxu0 %v309
    %375 = vmatprep.subr.bf16.mxu0 %v312
    %376 = vmatpush1.bf16.msra.mxu0 %v311
    %377 = vmatprep.subr.bf16.mxu0 %v314
    %378 = vmatpush1.bf16.msra.mxu0 %v313
    %379 = vmatprep.subr.bf16.mxu0 %v316
    %380 = vmatpush1.bf16.msra.mxu0 %v315
    %381 = vmatprep.subr.bf16.mxu0 %v318
    %382 = vmatpush1.bf16.msra.mxu0 %v317
    %383 = vmatprep.subr.bf16.mxu0 %v320
    %384 = vmatpush1.bf16.msra.mxu0 %v319
    %385 = vmatprep.subr.bf16.mxu0 %v322
    %386 = vmatpush1.bf16.msra.mxu0 %v321
    %387 = vmatprep.subr.bf16.mxu0 %v324
    %388 = vmatpush1.bf16.msra.mxu0 %v323
    %389 = vmatprep.subr.bf16.mxu0 %v326
    %390 = vmatpush1.bf16.msra.mxu0 %v325
    %391 = vmatprep.subr.bf16.mxu0 %v328
    %392 = vmatpush1.bf16.msra.mxu0 %v327
    %393 = vmatprep.subr.bf16.mxu0 %v330
    %394 = vmatpush1.bf16.msra.mxu0 %v329
    %395 = vmatprep.subr.bf16.mxu0 %v332
    %396 = vmatpush1.bf16.msra.mxu0 %v331
    %397 = vmatprep.subr.bf16.mxu0 %v334
    %398 = vmatpush1.bf16.msra.mxu0 %v333
    %399 = vmatprep.subr.bf16.mxu0 %v336
    %400 = vmatpush1.bf16.msra.mxu0 %v335
    %401 = vmatprep.subr.bf16.mxu0 %v338
    %402 = vmatpush1.bf16.msra.mxu0 %v337
    %403 = vmatprep.mubr.bf16.mxu0 %v170
    %404 = vmatmul.mubr.bf16.gmra.mrb[0].mxu0 %v169
    %v405 = vpop.f32.mrb[0].mxu0
    %v406 = vadd.f32 %v206, %v405
    %v407 = vpop.f32.mrb[0].mxu0
    %v408 = vadd.f32 %v210, %v407
    %v409 = vpop.f32.mrb[0].mxu0
    %v410 = vpop.f32.mrb[0].mxu0
    %411 = vdwg.mxu0
    %v412 = vmax.f32 %v406, 0.0
    %v413 = vmax.f32 %v408, 0.0
    %v414 = vpack.c.bf16 %v412, %v412
    %v415 = vpack.c.bf16 %v413, %v413
    %v416 = vld [vmem:[#allocation2 + $0x140] sm:$0xf]
    %v417 = vld [vmem:[#allocation2 + $0x148] sm:$0xf]
    %v418 = vld [vmem:[#allocation2 + $0x150] sm:$0xf]
    %v419 = vld [vmem:[#allocation2 + $0x158] sm:$0xf]
    %v420 = vld [vmem:[#allocation2 + $0x160] sm:$0xf]
    %v421 = vld [vmem:[#allocation2 + $0x168] sm:$0xf]
    %v422 = vld [vmem:[#allocation2 + $0x170] sm:$0xf]
    %v423 = vld [vmem:[#allocation2 + $0x178] sm:$0xf]
    %v424 = vld [vmem:[#allocation2 + $0x180] sm:$0xf]
    %v425 = vld [vmem:[#allocation2 + $0x188] sm:$0xf]
    %v426 = vld [vmem:[#allocation2 + $0x190] sm:$0xf]
    %v427 = vld [vmem:[#allocation2 + $0x198] sm:$0xf]
    %v428 = vld [vmem:[#allocation2 + $0x1a0] sm:$0xf]
    %v429 = vld [vmem:[#allocation2 + $0x1a8] sm:$0xf]
    %v430 = vld [vmem:[#allocation2 + $0x1b0] sm:$0xf]
    %v431 = vld [vmem:[#allocation2 + $0x1b8] sm:$0xf]
    %v432 = vld [vmem:[#allocation2 + $0x1c0] sm:$0xf]
    %v433 = vld [vmem:[#allocation2 + $0x1c8] sm:$0xf]
    %v434 = vld [vmem:[#allocation2 + $0x1d0] sm:$0xf]
    %v435 = vld [vmem:[#allocation2 + $0x1d8] sm:$0xf]
    %v436 = vld [vmem:[#allocation2 + $0x1e0] sm:$0xf]
    %v437 = vld [vmem:[#allocation2 + $0x1e8] sm:$0xf]
    %v438 = vld [vmem:[#allocation2 + $0x1f0] sm:$0xf]
    %v439 = vld [vmem:[#allocation2 + $0x1f8] sm:$0xf]
    %v440 = vld [vmem:[#allocation2 + $0x200] sm:$0xf]
    %v441 = vld [vmem:[#allocation2 + $0x208] sm:$0xf]
    %v442 = vld [vmem:[#allocation2 + $0x210] sm:$0xf]
    %v443 = vld [vmem:[#allocation2 + $0x218] sm:$0xf]
    %v444 = vld [vmem:[#allocation2 + $0x220] sm:$0xf]
    %v445 = vld [vmem:[#allocation2 + $0x228] sm:$0xf]
    %v446 = vld [vmem:[#allocation2 + $0x230] sm:$0xf]
    %v447 = vld [vmem:[#allocation2 + $0x238] sm:$0xf]
    %v448 = vlaneseq
    %v449 = vshrl.u32 %v448, 7
    %v450 = vsub.s32 0, %v449
    %v451 = vrot.slane %v43, %v450
    %v484 = vunpack.c.l.b16 %v416
    %v485 = vunpack.c.l.b16 %v417
    %v486 = vunpack.c.l.b16 %v418
    %v487 = vunpack.c.l.b16 %v419
    %v488 = vunpack.c.l.b16 %v420
    %v489 = vunpack.c.l.b16 %v421
    %v490 = vunpack.c.l.b16 %v422
    %v491 = vunpack.c.l.b16 %v423
    %v492 = vunpack.c.l.b16 %v424
    %v493 = vunpack.c.l.b16 %v425
    %v494 = vunpack.c.l.b16 %v426
    %v495 = vunpack.c.l.b16 %v427
    %v496 = vunpack.c.l.b16 %v428
    %v497 = vunpack.c.l.b16 %v429
    %v498 = vunpack.c.l.b16 %v430
    %v499 = vunpack.c.l.b16 %v431
    %v500 = vunpack.c.l.b16 %v432
    %v501 = vunpack.c.l.b16 %v433
    %v502 = vunpack.c.l.b16 %v434
    %v503 = vunpack.c.l.b16 %v435
    %v504 = vunpack.c.l.b16 %v436
    %v505 = vunpack.c.l.b16 %v437
    %v506 = vunpack.c.l.b16 %v438
    %v507 = vunpack.c.l.b16 %v439
    %v508 = vunpack.c.l.b16 %v440
    %v509 = vunpack.c.l.b16 %v441
    %v510 = vunpack.c.l.b16 %v442
    %v511 = vunpack.c.l.b16 %v443
    %v512 = vunpack.c.l.b16 %v444
    %v513 = vunpack.c.l.b16 %v445
    %v514 = vunpack.c.l.b16 %v446
    %v515 = vunpack.c.l.b16 %v447
    %v516 = vpack.c.b16 %v485, %v484
    %v517 = vpack.c.b16 %v487, %v486
    %v518 = vpack.c.b16 %v489, %v488
    %v519 = vpack.c.b16 %v491, %v490
    %v520 = vpack.c.b16 %v493, %v492
    %v521 = vpack.c.b16 %v495, %v494
    %v522 = vpack.c.b16 %v497, %v496
    %v523 = vpack.c.b16 %v499, %v498
    %v524 = vpack.c.b16 %v501, %v500
    %v525 = vpack.c.b16 %v503, %v502
    %v526 = vpack.c.b16 %v505, %v504
    %v527 = vpack.c.b16 %v507, %v506
    %v528 = vpack.c.b16 %v509, %v508
    %v529 = vpack.c.b16 %v511, %v510
    %v530 = vpack.c.b16 %v513, %v512
    %v531 = vpack.c.b16 %v515, %v514
    %548 = vmatprep.subr.bf16.mxu0 0
    %549 = vmatpush1.bf16.msra.mxu0 %v516
    %550 = vmatprep.subr.bf16.mxu0 0
    %551 = vmatpush1.bf16.msra.mxu0 %v517
    %552 = vmatprep.subr.bf16.mxu0 0
    %553 = vmatpush1.bf16.msra.mxu0 %v518
    %554 = vmatprep.subr.bf16.mxu0 0
    %555 = vmatpush1.bf16.msra.mxu0 %v519
    %556 = vmatprep.subr.bf16.mxu0 0
    %557 = vmatpush1.bf16.msra.mxu0 %v520
    %558 = vmatprep.subr.bf16.mxu0 0
    %559 = vmatpush1.bf16.msra.mxu0 %v521
    %560 = vmatprep.subr.bf16.mxu0 0
    %561 = vmatpush1.bf16.msra.mxu0 %v522
    %562 = vmatprep.subr.bf16.mxu0 0
    %563 = vmatpush1.bf16.msra.mxu0 %v523
    %564 = vmatprep.subr.bf16.mxu0 0
    %565 = vmatpush1.bf16.msra.mxu0 %v524
    %566 = vmatprep.subr.bf16.mxu0 0
    %567 = vmatpush1.bf16.msra.mxu0 %v525
    %568 = vmatprep.subr.bf16.mxu0 0
    %569 = vmatpush1.bf16.msra.mxu0 %v526
    %570 = vmatprep.subr.bf16.mxu0 0
    %571 = vmatpush1.bf16.msra.mxu0 %v527
    %572 = vmatprep.subr.bf16.mxu0 0
    %573 = vmatpush1.bf16.msra.mxu0 %v528
    %574 = vmatprep.subr.bf16.mxu0 0
    %575 = vmatpush1.bf16.msra.mxu0 %v529
    %576 = vmatprep.subr.bf16.mxu0 0
    %577 = vmatpush1.bf16.msra.mxu0 %v530
    %578 = vmatprep.subr.bf16.mxu0 0
    %579 = vmatpush1.bf16.msra.mxu0 %v531
    %580 = vmatprep.mubr.bf16.mxu0 %v415
    %581 = vmatmul.mubr.bf16.gmra.mrb[0].mxu0 %v414
    %v582 = vpop.f32.mrb[0].mxu0
    %v583 = vadd.f32 %v451, %v582
    %v584 = vpop.f32.mrb[0].mxu0
    %v585 = vpop.f32.mrb[0].mxu0
    %v586 = vpop.f32.mrb[0].mxu0
    %587 = vdwg.mxu0
    %589 = vrot.lane.b32.xlu0 %v583, 127
    %v590 = vpop.permute.xlu0 %589
    %vm592 = vcmp.ge.f32.partialorder %v583, %v590
    %593 = vrot.lane.b32.xlu0 %v583, 126
    %v594 = vpop.permute.xlu0 %593
    %vm596 = vcmp.ge.f32.partialorder %v583, %v594
    %vm597 = vmand %vm592, %vm596
    %v598 = vsel %vm592, -1.0, 1.0
    %600 = vrot.lane.b32.xlu0 %v598, 127
    %v601 = vpop.permute.xlu0 %600
    %v603 = vsel %vm597, 0.0, %v601
    %v604 = vld [vmem:[%s2] sm:$0xff]
    %v605 = vmul.f32 %v604, %v590
    %v606 = vadd.f32 %v583, %v605
    %608 = vrot.lane.b32.xlu0 %v603, 126
    %v609 = vpop.permute.xlu0 %608
    %v611 = vadd.f32 %v606, %v609
    %613 = vrot.lane.b32.xlu0 %v604, 127
    %v614 = vpop.permute.xlu0 %613
    %v616 = vsub.f32 %v611, %v614
    %vm617 = vcmask 7168
    %618 = vst.msk [vmem:[%s4] sm:$0xff] %vm617, %v616
    // Predicated region
    $region22: #{airl_forward.1} parent=1 // pred_check
      _
    $region23: #{airl_forward.1} parent=1 // pred_check_branch
      %620 = sbr.rel (0) target = $region25
    $region24: #{airl_forward.1} parent=1 // pred_region
      _
    $region25: #{airl_forward.1} parent=1 // pred_fallthru
      _
    // Predicated region
    $region26: #{airl_forward.1} parent=1 // pred_check
      _
    $region27: #{airl_forward.1} parent=1 // pred_check_branch
      %622 = sbr.rel (0) target = $region29
    $region28: #{airl_forward.1} parent=1 // pred_region
      _
    $region29: #{airl_forward.1} parent=1 // pred_fallthru
      _
    %623 = vsyncpa [#allocation3], 1

</llo_original>
